<compile_context>
chip_gen: v7x
topology: tpu7x:2x2x1
jax: 0.10.0
libtpu: 0.0.40
codegen_flags: <defaults>
</compile_context>

<pallas_src>
import functools

import jax
import jax.numpy as jnp
from jax.experimental import pallas as pl
from jax.experimental.pallas import tpu as pltpu


def _round_up(x, m):
    return (x + m - 1) // m * m


# ----------------------------------------------------------------------------
# Pallas kernel: batched (over phases) matmul + bias + optional ReLU.
#   a: (G, M, K) bf16, b: (G, K, N) bf16, bias: (N,) f32 -> out (G, M, N)
# Full-K tiles are used whenever K <= tk_max, so the common path is a single
# k step with the epilogue fused in (no accumulator revisit / pl.when).
# ----------------------------------------------------------------------------
def _bmm_bias_act_kernel(a_ref, b_ref, bias_ref, o_ref, *maybe_acc,
                         apply_relu, n_k):
    a = a_ref[0]            # (tm, tk)
    b = b_ref[0]            # (tk, tn)
    if n_k == 1:
        r = jnp.dot(a, b, preferred_element_type=jnp.float32) + bias_ref[...]
        if apply_relu:
            r = jnp.maximum(r, 0.0)
        o_ref[0] = r.astype(o_ref.dtype)
    else:
        acc_ref = maybe_acc[0]

        @pl.when(pl.program_id(3) == 0)
        def _():
            acc_ref[...] = jnp.zeros_like(acc_ref)

        acc_ref[...] += jnp.dot(a, b, preferred_element_type=jnp.float32)

        @pl.when(pl.program_id(3) == n_k - 1)
        def _():
            r = acc_ref[...] + bias_ref[...]
            if apply_relu:
                r = jnp.maximum(r, 0.0)
            o_ref[0] = r.astype(o_ref.dtype)


def pallas_bmm_bias_act(a, b, bias, *, apply_relu=False,
                        out_dtype=jnp.float32,
                        tm_max=512, tn_max=256, tk_max=2048):
    """out[g] = act(a[g] @ b[g] + bias). bf16 MXU operands, f32 accumulation."""
    G, M, K = a.shape
    G2, K2, N = b.shape
    assert G == G2 and K == K2 and bias.shape == (N,)

    tm = min(tm_max, _round_up(M, 16))
    Mp = _round_up(M, tm)
    tn = min(tn_max, _round_up(N, 128))
    Np = _round_up(N, tn)
    Kp = _round_up(K, 128)
    if Kp <= tk_max:
        tk = Kp
    else:
        tk = tk_max
        Kp = _round_up(K, tk)
    n_k = Kp // tk

    a = a.astype(jnp.bfloat16)
    b = b.astype(jnp.bfloat16)
    if (Mp, Kp) != (M, K):                  # pad only when misaligned
        a = jnp.pad(a, ((0, 0), (0, Mp - M), (0, Kp - K)))
    if (Kp, Np) != (K, N):
        b = jnp.pad(b, ((0, 0), (0, Kp - K), (0, Np - N)))
    bias_p = bias.astype(jnp.float32)
    if Np != N:
        bias_p = jnp.pad(bias_p, (0, Np - N))
    bias_p = bias_p.reshape(1, Np)

    grid = (G, Mp // tm, Np // tn, n_k)
    scratch = [pltpu.VMEM((tm, tn), jnp.float32)] if n_k > 1 else []

    out = pl.pallas_call(
        functools.partial(_bmm_bias_act_kernel, apply_relu=apply_relu, n_k=n_k),
        out_shape=jax.ShapeDtypeStruct((G, Mp, Np), out_dtype),
        grid_spec=pltpu.PrefetchScalarGridSpec(
            num_scalar_prefetch=0,
            grid=grid,
            in_specs=[
                pl.BlockSpec((1, tm, tk), lambda g, i, j, k: (g, i, k)),
                pl.BlockSpec((1, tk, tn), lambda g, i, j, k: (g, k, j)),
                pl.BlockSpec((1, tn), lambda g, i, j, k: (0, j)),
            ],
            out_specs=pl.BlockSpec((1, tm, tn), lambda g, i, j, k: (g, i, j)),
            scratch_shapes=scratch,
        ),
        compiler_params=pltpu.CompilerParams(
            dimension_semantics=("parallel", "parallel", "parallel", "arbitrary")),
    )(a, b, bias_p)

    if (Mp, Np) != (M, N):
        out = out[:, :M, :N]
    return out


def pallas_matmul_bias_act(a, b, bias, **kw):
    """2-D convenience wrapper: act(a @ b + bias)."""
    return pallas_bmm_bias_act(a[None], b[None], bias, **kw)[0]


# ----------------------------------------------------------------------------
# ConvTranspose2d(cin, cout, 4, stride=2, padding=1) via 4-phase decomposition.
# Output pixel (2q+ry, 2p+rx) = sum_{dy,dx,ci} xp[q+ry+dy, p+rx+dx, ci]
#                               * w[ci, co, 3-2dy-ry, 3-2dx-rx]      (xp = pad1)
# i.e. each of the 4 output phases is an independent 2x2 conv -> 4x fewer
# FLOPs / patch bytes than zero-insertion im2col.
# ----------------------------------------------------------------------------
def _deconv_phase_operands(x, w_t):
    """x: (N,H,W,C), w_t: (cin,cout,4,4) -> a:(4, N*H*W, 4C), b:(4, 4C, cout)."""
    N, H, W, C = x.shape
    xp = jnp.pad(x, ((0, 0), (1, 1), (1, 1), (0, 0)))
    a_list, b_list = [], []
    for ry in (0, 1):
        for rx in (0, 1):
            cols = [xp[:, ry + dy: ry + dy + H, rx + dx: rx + dx + W, :]
                    for dy in (0, 1) for dx in (0, 1)]
            a_list.append(jnp.concatenate(cols, axis=-1).reshape(N * H * W, 4 * C))
            wm = [w_t[:, :, 3 - 2 * dy - ry, 3 - 2 * dx - rx]
                  for dy in (0, 1) for dx in (0, 1)]
            b_list.append(jnp.concatenate(wm, axis=0))          # (4C, cout)
    return jnp.stack(a_list, axis=0), jnp.stack(b_list, axis=0)


def _interleave_phases(out, N, H, W, cout):
    """out: (4, N*H*W, cout), phase index = 2*ry + rx -> (N, 2H, 2W, cout)."""
    out = out.reshape(2, 2, N, H, W, cout)
    out = jnp.transpose(out, (2, 3, 0, 4, 1, 5))
    return out.reshape(N, 2 * H, 2 * W, cout)


def conv_transpose2d_k4s2p1_relu(x, w_t, bias):
    """x: NHWC (bf16), w_t: (cin, cout, 4, 4), bias: (cout,) -> NHWC bf16."""
    N, H, W, C = x.shape
    cout = w_t.shape[1]
    a, b = _deconv_phase_operands(x, w_t.astype(x.dtype))
    out = pallas_bmm_bias_act(a, b, bias, apply_relu=True,
                              out_dtype=jnp.bfloat16)
    return _interleave_phases(out, N, H, W, cout)


def conv2d_k4s1p1(x, w, bias, out_dtype=jnp.float32):
    """PyTorch Conv2d(cin, cout, 4, stride=1, padding=1). x NHWC, w (cout,cin,4,4)."""
    N, H, W, C = x.shape
    cout = w.shape[0]
    xp = jnp.pad(x, ((0, 0), (1, 1), (1, 1), (0, 0)))
    Ho, Wo = H - 1, W - 1
    cols = [xp[:, ky:ky + Ho, kx:kx + Wo, :] for ky in range(4) for kx in range(4)]
    patches = jnp.stack(cols, axis=3).reshape(N * Ho * Wo, 16 * C)
    w_mat = jnp.transpose(w.astype(x.dtype), (2, 3, 1, 0)).reshape(16 * C, cout)
    out = pallas_matmul_bias_act(patches, w_mat, bias, apply_relu=False,
                                 out_dtype=out_dtype)
    return out.reshape(N, Ho, Wo, cout)


# ----------------------------------------------------------------------------
# Pure-JAX reference deconv (zero-insertion formulation) used only to verify
# the phase decomposition at start-up.
# ----------------------------------------------------------------------------
def _ref_deconv_zero_insert(x, w_t, bias):
    N, H, W, C = x.shape
    cout = w_t.shape[1]
    xz = jnp.zeros((N, 2 * H - 1, 2 * W - 1, C), x.dtype).at[:, ::2, ::2, :].set(x)
    xzp = jnp.pad(xz, ((0, 0), (2, 2), (2, 2), (0, 0)))
    w_conv = jnp.flip(w_t, axis=(2, 3))
    out = jnp.zeros((N, 2 * H, 2 * W, cout), jnp.float32)
    for ky in range(4):
        for kx in range(4):
            out = out + jnp.einsum('nhwc,co->nhwo',
                                   xzp[:, ky:ky + 2 * H, kx:kx + 2 * W, :],
                                   w_conv[:, :, ky, kx],
                                   precision=jax.lax.Precision.HIGHEST)
    return jnp.maximum(out + bias, 0.0)


# ----------------------------------------------------------------------------
# Module structure (mirrors construct_decoding_layers / ConvDecoder.__init__).
# ----------------------------------------------------------------------------
def construct_decoding_layer_shapes(img_size):
    step = lambda f: f * 2 if f < 512 else f
    f_in = 64
    filters = []
    size = img_size
    while size > 4:
        f_out = step(f_in)
        filters.append((f_out, f_in))
        f_in = f_out
        size = size // 2
    layer_shapes = [(fi, fo) for (fi, fo) in reversed(filters)]  # (cin, cout)
    return layer_shapes, filters[-1][1]


def init_params(key, in_dim, img_size, hidden_layers, hidden_size, channels):
    layer_shapes, f_latent = construct_decoding_layer_shapes(img_size)
    keys = iter(jax.random.split(key, 4 * (len(layer_shapes) + hidden_layers + 4)))

    def linear(fan_in, fan_out):
        w = jax.random.normal(next(keys), (fan_out, fan_in), jnp.float32) / jnp.sqrt(fan_in)
        b = 0.01 * jax.random.normal(next(keys), (fan_out,), jnp.float32)
        return (w, b)

    params = {}
    out_dim = hidden_size if hidden_layers > 0 else f_latent * 4 * 4
    params["first_fc"] = linear(in_dim, out_dim)
    hidden = []
    if hidden_layers > 0:
        for _ in range(hidden_layers - 1):
            hidden.append(linear(hidden_size, hidden_size))
        hidden.append(linear(hidden_size, f_latent * 4 * 4))
    params["hidden"] = hidden

    conv = []
    for (cin, cout) in layer_shapes:
        w = jax.random.normal(next(keys), (cin, cout, 4, 4), jnp.float32) / jnp.sqrt(cin * 16)
        b = 0.01 * jax.random.normal(next(keys), (cout,), jnp.float32)
        conv.append((w, b))
    params["conv"] = conv

    w = jax.random.normal(next(keys), (channels, 64, 4, 4), jnp.float32) / jnp.sqrt(64 * 16)
    b = 0.01 * jax.random.normal(next(keys), (channels,), jnp.float32)
    params["to_rgb"] = (w, b)
    return params


def fuse_fc_params(params):
    """Pre-compose first_fc + hidden Linears (reference has no nonlinearity
    between them, so the affine maps compose exactly). Done once, outside jit."""
    w, b = params["first_fc"]
    W = w.astype(jnp.float32)
    B = b.astype(jnp.float32)
    for (wh, bh) in params["hidden"]:
        W = wh @ W
        B = wh @ B + bh
    params = dict(params)
    params["fc_combined"] = (W, B)           # (f_latent*16, in_dim), (f_latent*16,)
    return params


def conv_decoder_forward(params, z, *, img_size, channels):
    # z = first_fc(z); z = hidden_layers(z)  -> single pre-composed affine map.
    # Tiny (batch x in_dim) matmul: not worth a pallas_call (would waste 98% of
    # MXU rows), per perf review.
    w_c, b_c = params["fc_combined"]
    z = jnp.dot(z, w_c.T, precision=jax.lax.Precision.HIGHEST) + b_c

    # y = z.view(-1, 512, 4, 4)  (matches the reference's hardcoded 512, NCHW)
    y = z.reshape(-1, 512, 4, 4)
    y = jnp.transpose(y, (0, 2, 3, 1)).astype(jnp.bfloat16)   # NCHW -> NHWC, bf16

    # decoder up-conv stack (4-phase deconv, Pallas batched matmul per layer)
    for (w_t, b_t) in params["conv"]:
        y = conv_transpose2d_k4s2p1_relu(y, w_t, b_t)

    # to_rgb: Conv2d(64, channels, 4, 1, 1)  (spatial shrinks by 1)
    y = conv2d_k4s1p1(y, params["to_rgb"][0], params["to_rgb"][1],
                      out_dtype=jnp.float32)

    # prep_shape: F.interpolate(size=(img_size, img_size)), default mode='nearest'
    H, W = y.shape[1], y.shape[2]
    idx_h = jnp.floor(jnp.arange(img_size) * (H / img_size)).astype(jnp.int32)
    idx_w = jnp.floor(jnp.arange(img_size) * (W / img_size)).astype(jnp.int32)
    y = y[:, idx_h, :, :][:, :, idx_w, :]

    return jnp.transpose(y, (0, 3, 1, 2))                     # NHWC -> NCHW


if __name__ == "__main__":
    IN_DIM, IMG_SIZE, HIDDEN_LAYERS, HIDDEN_SIZE, CHANNELS, BATCH = 32, 64, 2, 128, 3, 2

    key = jax.random.PRNGKey(0)
    kp, kz, ka, kb, kc, kx, kw, kbb = jax.random.split(key, 8)
    params = init_params(kp, IN_DIM, IMG_SIZE, HIDDEN_LAYERS, HIDDEN_SIZE, CHANNELS)
    params = fuse_fc_params(params)
    z = jax.random.normal(kz, (BATCH, IN_DIM), jnp.float32)

    # 1) sanity check of the Pallas matmul kernel vs. jnp (bf16 operands, f32 acc)
    a = jax.random.normal(ka, (37, 70), jnp.float32)
    b = jax.random.normal(kb, (70, 50), jnp.float32)
    c = jax.random.normal(kc, (50,), jnp.float32)
    got = jax.block_until_ready(pallas_matmul_bias_act(a, b, c, apply_relu=True))
    ref = jnp.maximum(jnp.dot(a.astype(jnp.bfloat16), b.astype(jnp.bfloat16),
                              preferred_element_type=jnp.float32) + c, 0.0)
    assert jnp.allclose(got, ref, atol=1e-2, rtol=1e-2)

    # 2) sanity check of the 4-phase deconv decomposition (pure f32 math) vs.
    #    the zero-insertion reference
    xt = jax.random.normal(kx, (1, 5, 5, 8), jnp.float32)
    wt = 0.1 * jax.random.normal(kw, (8, 6, 4, 4), jnp.float32)
    bt = 0.1 * jax.random.normal(kbb, (6,), jnp.float32)
    ap, bp = _deconv_phase_operands(xt, wt)
    got_d = _interleave_phases(
        jnp.maximum(jnp.einsum('gmk,gkn->gmn', ap, bp,
                               precision=jax.lax.Precision.HIGHEST) + bt, 0.0),
        1, 5, 5, 6)
    ref_d = _ref_deconv_zero_insert(xt, wt, bt)
    assert jnp.allclose(got_d, ref_d, atol=1e-4, rtol=1e-4)

    # 3) full decoder forward
    fwd = jax.jit(functools.partial(conv_decoder_forward,
                                    img_size=IMG_SIZE, channels=CHANNELS))
    out = jax.block_until_ready(fwd(params, z))

    assert out.shape == (BATCH, CHANNELS, IMG_SIZE, IMG_SIZE), out.shape
    assert out.dtype == jnp.float32
    assert bool(jnp.all(jnp.isfinite(out)))
    print("KERNEL_OK")
</pallas_src>

<mosaic_0001>
module attributes {stable_mosaic.version = 11 : i64} {
  func.func @_bmm_bias_act_kernel(%arg0: i32, %arg1: i32, %arg2: i32, %arg3: i32, %arg4: memref<1x48x128xbf16, #tpu.memory_space<vmem>>, %arg5: memref<1x128x128xbf16, #tpu.memory_space<vmem>>, %arg6: memref<1x128xf32, #tpu.memory_space<vmem>>, %arg7: memref<1x48x128xf32, #tpu.memory_space<vmem>>) attributes {dimension_semantics = [#tpu.dimension_semantics<parallel>, #tpu.dimension_semantics<parallel>, #tpu.dimension_semantics<parallel>, #tpu.dimension_semantics<arbitrary>], iteration_bounds = array<i64: 1, 1, 1, 1>, scalar_prefetch = 0 : i64, scratch_operands = 0 : i64, tpu.core_type = #tpu.core_type<tc>, window_params = [{transform_indices = @transform_0, window_bounds = array<i64: 1, 48, 128>}, {transform_indices = @transform_1, window_bounds = array<i64: 1, 128, 128>}, {transform_indices = @transform_2, window_bounds = array<i64: 1, 128>}, {transform_indices = @transform_3, window_bounds = array<i64: 1, 48, 128>}]} {
    %c0 = arith.constant 0 : index
    %c0_0 = arith.constant 0 : index
    %c0_1 = arith.constant 0 : index
    %0 = vector.load %arg4[%c0, %c0_0, %c0_1] : memref<1x48x128xbf16, #tpu.memory_space<vmem>>, vector<1x48x128xbf16>
    %1 = vector.shape_cast %0 : vector<1x48x128xbf16> to vector<48x128xbf16>
    %c0_2 = arith.constant 0 : index
    %c0_3 = arith.constant 0 : index
    %c0_4 = arith.constant 0 : index
    %2 = vector.load %arg5[%c0_2, %c0_3, %c0_4] : memref<1x128x128xbf16, #tpu.memory_space<vmem>>, vector<1x128x128xbf16>
    %3 = vector.shape_cast %2 : vector<1x128x128xbf16> to vector<128x128xbf16>
    %cst = arith.constant dense<0.000000e+00> : vector<48x128xf32>
    %4 = tpu.matmul %1, %3, %cst {dimension_numbers = #tpu.dot_dimension_numbers<[1], [0], [0], [1], [0, 0, 1, 1], [], []>} : vector<48x128xbf16>, vector<128x128xbf16>, vector<48x128xf32> -> vector<48x128xf32>
    %c0_5 = arith.constant 0 : index
    %c0_6 = arith.constant 0 : index
    %5 = vector.load %arg6[%c0_5, %c0_6] : memref<1x128xf32, #tpu.memory_space<vmem>>, vector<1x128xf32>
    %6 = vector.broadcast %5 : vector<1x128xf32> to vector<48x128xf32>
    %7 = arith.addf %4, %6 : vector<48x128xf32>
    %cst_7 = arith.constant 0.000000e+00 : f32
    %8 = vector.broadcast %cst_7 : f32 to vector<48x128xf32>
    %9 = arith.maximumf %7, %8 : vector<48x128xf32>
    %c0_8 = arith.constant 0 : index
    %c0_9 = arith.constant 0 : index
    %c0_10 = arith.constant 0 : index
    %10 = vector.load %arg7[%c0_8, %c0_9, %c0_10] : memref<1x48x128xf32, #tpu.memory_space<vmem>>, vector<1x48x128xf32>
    %11 = vector.shape_cast %10 : vector<1x48x128xf32> to vector<48x128xf32>
    %12 = vector.shape_cast %9 : vector<48x128xf32> to vector<1x48x128xf32>
    tpu.vector_store %arg7[%c0_8, %c0_9, %c0_10], %12 {strides = array<i32>} : memref<1x48x128xf32, #tpu.memory_space<vmem>>, vector<1x48x128xf32>,
    return
  }
  func.func @transform_0(%arg0: i32, %arg1: i32, %arg2: i32, %arg3: i32) -> (i32, i32, i32) {
    %c0_i32 = arith.constant 0 : i32
    return %arg0, %arg1, %arg3 : i32, i32, i32
  }
  func.func @transform_1(%arg0: i32, %arg1: i32, %arg2: i32, %arg3: i32) -> (i32, i32, i32) {
    %c0_i32 = arith.constant 0 : i32
    return %arg0, %arg3, %arg2 : i32, i32, i32
  }
  func.func @transform_2(%arg0: i32, %arg1: i32, %arg2: i32, %arg3: i32) -> (i32, i32) {
    %c0_i32 = arith.constant 0 : i32
    %c0_i32_0 = arith.constant 0 : i32
    return %c0_i32, %arg2 : i32, i32
  }
  func.func @transform_3(%arg0: i32, %arg1: i32, %arg2: i32, %arg3: i32) -> (i32, i32, i32) {
    %c0_i32 = arith.constant 0 : i32
    return %arg0, %arg1, %arg2 : i32, i32, i32
  }
}

</mosaic_0001>

<llo_original>
// kernel: tpu_custom_call.1
$region0: #{tpu_custom_call.1}
  #allocation0 [shape = 'u32[]', space=smem, size = 0x4, offset = 0x4, fixed_abs, tag = 'smem constant byte address 0x4 - core index']
  #allocation1 [shape = 'u32[144,128]{1,0:T(1,128)}', space=vmem, size = 0x12000, scoped, tag = 'internal scratch']
  %s0 = inlined_call_operand.hbm [shape: bf16[1,48,128], index: 0, kind: input, shape index: {}]
  %s1 = inlined_call_operand.hbm [shape: bf16[1,128,128], index: 1, kind: input, shape index: {}]
  %s2 = inlined_call_operand.vmem [shape: f32[1,128], index: 2, kind: input, shape index: {}]
  %s3 = inlined_call_operand.hbm [shape: f32[1,48,128], index: 3, kind: output, shape index: {}]
  %s4 = sld [smem:[#allocation0]]
  $region30: #{tpu_custom_call.1} parent=0
    _
  %s6 = ssub.s32 1, %s4
  %s7 = scalar_select 0, %s6, %s4
  $region1: #{tpu_custom_call.1} parent=0
    #allocation2 [shape = 'u8[12288]{0}', space=vmem, size = 0x3000, scoped, tag = 'input window, operand 0, single buffered']
    #allocation3 [shape = 's32[1]{0}', space=sflag, size = 0x4, scoped, tag = 'scoped memory for tpu_custom_call.1']
    #allocation4 [shape = 's32[1]{0}', space=sflag, size = 0x4, scoped, tag = 'scoped memory for tpu_custom_call.1']
    #allocation5 [shape = 'u8[32768]{0}', space=vmem, size = 0x8000, scoped, tag = 'input window, operand 1, single buffered']
    #allocation6 [shape = 's32[1]{0}', space=sflag, size = 0x4, scoped, tag = 'scoped memory for tpu_custom_call.1']
    #allocation7 [shape = 'u8[24576]{0}', space=vmem, size = 0x6000, scoped, tag = 'output window, operand 0, single buffered']
    %8 = vsyncpa [#allocation3], 0
    %9 = vsyncpa [#allocation6], 0
    %10 = vsyncpa [#allocation4], 0
    // Predicated region
    $region2: #{tpu_custom_call.1} parent=1 // pred_check
      _
    $region3: #{tpu_custom_call.1} parent=1 // pred_check_branch
      %12 = sbr.rel (0) target = $region5
    $region4: #{tpu_custom_call.1} parent=1 // pred_region
      %s14 = ssub.s32 384, 384
      %15 = vsyncadd [#allocation3], %s14
      %s16 = sshll.u32 [#allocation2], 4
      %s17 = int_to_ptr.vmem [resolvable:$true] %s16
      %22 = dma.hbm_to_vmem [thread:$0]  %s0, 384, %s17, [#allocation3], 64, 64, 4
    $region5: #{tpu_custom_call.1} parent=1 // pred_fallthru
      _
    // Predicated region
    $region6: #{tpu_custom_call.1} parent=1 // pred_check
      _
    $region7: #{tpu_custom_call.1} parent=1 // pred_check_branch
      %24 = sbr.rel (0) target = $region9
    $region8: #{tpu_custom_call.1} parent=1 // pred_region
      %s26 = ssub.s32 1024, 1024
      %27 = vsyncadd [#allocation6], %s26
      %s28 = sshll.u32 [#allocation5], 4
      %s29 = int_to_ptr.vmem [resolvable:$true] %s28
      %34 = dma.hbm_to_vmem [thread:$0]  %s1, 1024, %s29, [#allocation6], 64, 64, 4
    $region9: #{tpu_custom_call.1} parent=1 // pred_fallthru
      _
    // Predicated region
    $region10: #{tpu_custom_call.1} parent=1 // pred_check
      _
    $region11: #{tpu_custom_call.1} parent=1 // pred_check_branch
      %36 = sbr.rel (0) target = $region13
    $region12: #{tpu_custom_call.1} parent=1 // pred_region
      _
    $region13: #{tpu_custom_call.1} parent=1 // pred_fallthru
      _
    // Predicated region
    $region14: #{tpu_custom_call.1} parent=1 // pred_check
      _
    $region15: #{tpu_custom_call.1} parent=1 // pred_check_branch
      %38 = sbr.rel (0) target = $region17
    $region16: #{tpu_custom_call.1} parent=1 // pred_region
      %39 = dma.done [#allocation3], 384
    $region17: #{tpu_custom_call.1} parent=1 // pred_fallthru
      _
    // Predicated region
    $region18: #{tpu_custom_call.1} parent=1 // pred_check
      _
    $region19: #{tpu_custom_call.1} parent=1 // pred_check_branch
      %41 = sbr.rel (0) target = $region21
    $region20: #{tpu_custom_call.1} parent=1 // pred_region
      %42 = dma.done [#allocation6], 1024
    $region21: #{tpu_custom_call.1} parent=1 // pred_fallthru
      _
    %v44 = vld [vmem:[#allocation2] sm:$0xf]
    %v45 = vld [vmem:[#allocation2 + $0x4] sm:$0xf]
    %v46 = vld [vmem:[#allocation2 + $0x8] sm:$0xf]
    %v47 = vld [vmem:[#allocation2 + $0xc] sm:$0xf]
    %v48 = vld [vmem:[#allocation2 + $0x10] sm:$0xf]
    %v49 = vld [vmem:[#allocation2 + $0x14] sm:$0xf]
    %v50 = vld [vmem:[#allocation5] sm:$0xf]
    %v51 = vld [vmem:[#allocation5 + $0x4] sm:$0xf]
    %v52 = vld [vmem:[#allocation5 + $0x8] sm:$0xf]
    %v53 = vld [vmem:[#allocation5 + $0xc] sm:$0xf]
    %v54 = vld [vmem:[#allocation5 + $0x10] sm:$0xf]
    %v55 = vld [vmem:[#allocation5 + $0x14] sm:$0xf]
    %v56 = vld [vmem:[#allocation5 + $0x18] sm:$0xf]
    %v57 = vld [vmem:[#allocation5 + $0x1c] sm:$0xf]
    %v58 = vld [vmem:[#allocation5 + $0x20] sm:$0xf]
    %v59 = vld [vmem:[#allocation5 + $0x24] sm:$0xf]
    %v60 = vld [vmem:[#allocation5 + $0x28] sm:$0xf]
    %v61 = vld [vmem:[#allocation5 + $0x2c] sm:$0xf]
    %v62 = vld [vmem:[#allocation5 + $0x30] sm:$0xf]
    %v63 = vld [vmem:[#allocation5 + $0x34] sm:$0xf]
    %v64 = vld [vmem:[#allocation5 + $0x38] sm:$0xf]
    %v65 = vld [vmem:[#allocation5 + $0x3c] sm:$0xf]
    %v66 = vld [vmem:[%s2] sm:$0x1]
    %v68 = vlaneseq
    %v69 = vshrl.u32 %v68, 7
    %v70 = vsub.s32 0, %v69
    %v71 = vrot.slane %v66, %v70
    %v79 = vunpack.c.l.b16 %v44
    %v80 = vunpack.c.l.b16 %v45
    %v81 = vunpack.c.l.b16 %v46
    %v82 = vunpack.c.l.b16 %v47
    %v83 = vunpack.c.l.b16 %v48
    %v84 = vunpack.c.l.b16 %v49
    %v85 = vpack.c.b16 %v80, %v79
    %v86 = vpack.c.b16 %v82, %v81
    %v87 = vpack.c.b16 %v84, %v83
    %v107 = vunpack.c.l.b16 %v50
    %v108 = vunpack.c.l.b16 %v51
    %v109 = vunpack.c.l.b16 %v52
    %v110 = vunpack.c.l.b16 %v53
    %v111 = vunpack.c.l.b16 %v54
    %v112 = vunpack.c.l.b16 %v55
    %v113 = vunpack.c.l.b16 %v56
    %v114 = vunpack.c.l.b16 %v57
    %v115 = vunpack.c.l.b16 %v58
    %v116 = vunpack.c.l.b16 %v59
    %v117 = vunpack.c.l.b16 %v60
    %v118 = vunpack.c.l.b16 %v61
    %v119 = vunpack.c.l.b16 %v62
    %v120 = vunpack.c.l.b16 %v63
    %v121 = vunpack.c.l.b16 %v64
    %v122 = vunpack.c.l.b16 %v65
    %v123 = vpack.c.b16 %v108, %v107
    %v124 = vpack.c.b16 %v110, %v109
    %v125 = vpack.c.b16 %v112, %v111
    %v126 = vpack.c.b16 %v114, %v113
    %v127 = vpack.c.b16 %v116, %v115
    %v128 = vpack.c.b16 %v118, %v117
    %v129 = vpack.c.b16 %v120, %v119
    %v130 = vpack.c.b16 %v122, %v121
    %139 = vmatprep.subr.bf16.mxu0 0
    %140 = vmatpush1.bf16.msra.mxu0 %v123
    %141 = vmatprep.subr.bf16.mxu0 0
    %142 = vmatpush1.bf16.msra.mxu0 %v124
    %143 = vmatprep.subr.bf16.mxu0 0
    %144 = vmatpush1.bf16.msra.mxu0 %v125
    %145 = vmatprep.subr.bf16.mxu0 0
    %146 = vmatpush1.bf16.msra.mxu0 %v126
    %147 = vmatprep.subr.bf16.mxu0 0
    %148 = vmatpush1.bf16.msra.mxu0 %v127
    %149 = vmatprep.subr.bf16.mxu0 0
    %150 = vmatpush1.bf16.msra.mxu0 %v128
    %151 = vmatprep.subr.bf16.mxu0 0
    %152 = vmatpush1.bf16.msra.mxu0 %v129
    %153 = vmatprep.subr.bf16.mxu0 0
    %154 = vmatpush1.bf16.msra.mxu0 %v130
    %155 = vmatprep.subr.bf16.mxu0 0
    %156 = vmatpush1.bf16.msra.mxu0 0
    %157 = vmatprep.subr.bf16.mxu0 0
    %158 = vmatpush1.bf16.msra.mxu0 0
    %159 = vmatprep.subr.bf16.mxu0 0
    %160 = vmatpush1.bf16.msra.mxu0 0
    %161 = vmatprep.subr.bf16.mxu0 0
    %162 = vmatpush1.bf16.msra.mxu0 0
    %163 = vmatprep.subr.bf16.mxu0 0
    %164 = vmatpush1.bf16.msra.mxu0 0
    %165 = vmatprep.subr.bf16.mxu0 0
    %166 = vmatpush1.bf16.msra.mxu0 0
    %167 = vmatprep.subr.bf16.mxu0 0
    %168 = vmatpush1.bf16.msra.mxu0 0
    %169 = vmatprep.subr.bf16.mxu0 0
    %170 = vmatpush1.bf16.msra.mxu0 0
    %171 = vmatprep.mubr.bf16.mxu0 0
    %172 = vmatmul.mubr.bf16.gmra.mrb[0].mxu0 %v85
    %v173 = vpop.f32.mrb[0].mxu0
    %v174 = vadd.f32 %v71, %v173
    %v175 = vpop.f32.mrb[0].mxu0
    %v176 = vpop.f32.mrb[0].mxu0
    %v177 = vadd.f32 %v71, %v176
    %v178 = vpop.f32.mrb[0].mxu0
    %179 = vmatprep.mubr.bf16.mxu0 0
    %180 = vmatmul.mubr.bf16.gmra.mrb[0].mxu0 %v86
    %v181 = vpop.f32.mrb[0].mxu0
    %v182 = vadd.f32 %v71, %v181
    %v183 = vpop.f32.mrb[0].mxu0
    %v184 = vpop.f32.mrb[0].mxu0
    %v185 = vadd.f32 %v71, %v184
    %v186 = vpop.f32.mrb[0].mxu0
    %187 = vmatprep.mubr.bf16.mxu0 0
    %188 = vmatmul.mubr.bf16.gmra.mrb[0].mxu0 %v87
    %v189 = vpop.f32.mrb[0].mxu0
    %v190 = vadd.f32 %v71, %v189
    %v191 = vpop.f32.mrb[0].mxu0
    %v192 = vpop.f32.mrb[0].mxu0
    %v193 = vadd.f32 %v71, %v192
    %v194 = vpop.f32.mrb[0].mxu0
    %195 = vdwg.mxu0
    %v196 = vmax.f32 %v174, 0.0
    %v197 = vmax.f32 %v177, 0.0
    %v198 = vmax.f32 %v182, 0.0
    %v199 = vmax.f32 %v185, 0.0
    %v200 = vmax.f32 %v190, 0.0
    %v201 = vmax.f32 %v193, 0.0
    %202 = vst [vmem:[#allocation7] sm:$0xff] %v196
    %203 = vst [vmem:[#allocation7 + $0x8] sm:$0xff] %v197
    %204 = vst [vmem:[#allocation7 + $0x10] sm:$0xff] %v198
    %205 = vst [vmem:[#allocation7 + $0x18] sm:$0xff] %v199
    %206 = vst [vmem:[#allocation7 + $0x20] sm:$0xff] %v200
    %207 = vst [vmem:[#allocation7 + $0x28] sm:$0xff] %v201
    // Predicated region
    $region22: #{tpu_custom_call.1} parent=1 // pred_check
      _
    $region23: #{tpu_custom_call.1} parent=1 // pred_check_branch
      %209 = sbr.rel (0) target = $region25
    $region24: #{tpu_custom_call.1} parent=1 // pred_region
      %s211 = ssub.s32 768, 768
      %212 = vsyncadd [#allocation4], %s211
      %s213 = sshll.u32 [#allocation7], 4
      %s214 = int_to_ptr.vmem [resolvable:$true] %s213
      %219 = dma.vmem_to_hbm [thread:$0]  %s214, 768, %s3, [#allocation4], 128, 128, 8
    $region25: #{tpu_custom_call.1} parent=1 // pred_fallthru
      _
    // Predicated region
    $region26: #{tpu_custom_call.1} parent=1 // pred_check
      _
    $region27: #{tpu_custom_call.1} parent=1 // pred_check_branch
      %221 = sbr.rel (0) target = $region29
    $region28: #{tpu_custom_call.1} parent=1 // pred_region
      %222 = dma.done [#allocation4], 768
    $region29: #{tpu_custom_call.1} parent=1 // pred_fallthru
      _
    %223 = vsyncpa [#allocation3], 1
    %224 = vsyncpa [#allocation6], 1
    %225 = vsyncpa [#allocation4], 1

</llo_original>
